<compile_context>
chip_gen: v6e
topology: v6e:2x2x1
jax: 0.10.0
libtpu: 0.0.40
codegen_flags: <defaults>
</compile_context>

<pallas_src>
import jax
import jax.numpy as jnp
from jax.experimental import pallas as pl
from jax.experimental.pallas import tpu as pltpu

LANE = 128
SUBLANE = 8
N_PAD = 8                           # output lanes (2 real Q-values + 6 zero pads)
TB_MAX = 2048                       # batch-tile row cap
X_TILE_BUDGET = 24 * 1024 * 1024    # VMEM budget for the two double-buffered f32 x tiles


def _round_up(x, m):
    return ((x + m - 1) // m) * m


def dqn_kernel(x_ref, w1_ref, b1_ref, w2_ref, b2_ref, w3_ref, b3_ref, o_ref):
    """One batch tile of the DQN MLP (all f32, f32 MXU accumulation).

    x_ref : (TB, F)    f32   batch tile of flattened input (read once from HBM)
    w1_ref: (F, 24)    f32   resident across the whole grid
    b1_ref: (1, 24)    f32
    w2_ref: (24, 32)   f32
    b2_ref: (1, 32)    f32
    w3_ref: (32, 8)    f32   zero-padded along lanes (2 -> 8)
    b3_ref: (1, 8)     f32   zero-padded
    o_ref : (TB, 8)    f32   narrow output block (cols 2..7 are zero)
    """
    h1 = jnp.dot(x_ref[...], w1_ref[...], preferred_element_type=jnp.float32)
    h1 = jnp.maximum(h1 + b1_ref[...], 0.0)
    h2 = jnp.dot(h1, w2_ref[...], preferred_element_type=jnp.float32)
    h2 = jnp.maximum(h2 + b2_ref[...], 0.0)
    o_ref[...] = jnp.dot(h2, w3_ref[...], preferred_element_type=jnp.float32) + b3_ref[...]


def init_params(img_height, img_width, key):
    """nn.Linear-style uniform(+-1/sqrt(fan_in)) init.
    Weights stored as (in, out) so the kernel computes x @ W (== torch x @ W.T)."""
    in_f = img_height * img_width * 3
    dims = [(in_f, 24), (24, 32), (32, 2)]
    params = []
    for fi, fo in dims:
        key, kw, kb = jax.random.split(key, 3)
        bound = 1.0 / float(fi) ** 0.5
        w = jax.random.uniform(kw, (fi, fo), jnp.float32, -bound, bound)
        b = jax.random.uniform(kb, (1, fo), jnp.float32, -bound, bound)
        params.extend([w, b])
    return tuple(params)


def prepare_params(params):
    """One-time layout prep: zero-pad w3/b3's output dim 2 -> 8 so the kernel
    writes a narrow (TB, 8) block instead of a 128-lane one.  Everything stays
    f32; w1 is NOT padded along K (the x block uses a full-extent last dim)."""
    w1, b1, w2, b2, w3, b3 = params
    f = w1.shape[0]
    n_out = w3.shape[1]
    w3 = jnp.pad(w3, ((0, 0), (0, N_PAD - n_out)))
    b3 = jnp.pad(b3, ((0, 0), (0, N_PAD - n_out)))
    return (w1, b1, w2, b2, w3, b3), f, n_out


def _choose_batch_tile(batch, f):
    """Rows per grid step: big enough to amortize per-step overhead, small
    enough that two double-buffered f32 x tiles fit the VMEM budget, and
    split so the grid has >= 2 steps when B >= 16 (v7x megacore).  The tile
    is ~ ceil(B / n_tiles) rounded up to 8, so the padded tail is tiny."""
    per_row = f * 4                                       # f32 bytes per x row
    cap = (X_TILE_BUDGET // (2 * per_row)) // SUBLANE * SUBLANE
    cap = min(TB_MAX, max(SUBLANE, cap))
    n_tiles = pl.cdiv(batch, cap)
    if batch >= 2 * SUBLANE:
        n_tiles = max(n_tiles, 2)                         # give both v7x TensorCores work
    tb = _round_up(pl.cdiv(batch, n_tiles), SUBLANE)
    return min(tb, cap)


def _vmem_limit_bytes(tb, f):
    """Explicit scoped-VMEM request: double-buffered x tile + out tile +
    lane-padded intermediates + resident params, with slack.  Clamped to a
    range that is safe on v5e/v6e (128 MiB) and v7x (64 MiB physical)."""
    w_bytes = 2 * 4 * (f * 24 + 24 + 24 * 32 + 32 + 32 * N_PAD + N_PAD)
    x_bytes = 2 * tb * f * 4
    o_bytes = 2 * tb * LANE * 4          # lane-padded upper bound for the (tb, 8) block
    tmp_bytes = 2 * tb * LANE * 4        # h1 / h2 intermediates (lane-padded)
    total = x_bytes + o_bytes + tmp_bytes + w_bytes + (4 << 20)
    return int(min(max(total, 32 << 20), 50 << 20))


def _resident(a):
    """Full-array block with a constant index_map: DMA'd once, stays in VMEM.
    (pl.Buffered(1) would save the unused second buffer, ~0.15 MiB -- negligible
    at our VMEM limits, so we keep the default pipeline mode for robustness.)"""
    zeros = (0,) * a.ndim
    return pl.BlockSpec(a.shape, lambda i: zeros)


def dqn_forward(x_nchw, prepared):
    """x_nchw: (B, 3, H, W) float32. Returns (B, 2) float32 Q-values."""
    (w1, b1, w2, b2, w3, b3), f, n_out = prepared
    B = x_nchw.shape[0]

    # flatten(start_dim=1): free bitcast for contiguous NCHW; x stays f32 and is
    # read exactly once from HBM by the kernel (no cast / K-pad passes).
    x = x_nchw.reshape(B, f)

    tb = _choose_batch_tile(B, f)
    b_pad = _round_up(B, tb)
    if b_pad > B:
        # Minimal-tail pad (usually < 8 rows); skipped entirely when tb | B.
        x = jnp.pad(x, ((0, b_pad - B), (0, 0)))
    grid = (b_pad // tb,)

    out = pl.pallas_call(
        dqn_kernel,
        out_shape=jax.ShapeDtypeStruct((b_pad, N_PAD), jnp.float32),
        grid=grid,
        in_specs=[
            pl.BlockSpec((tb, f), lambda i: (i, 0)),   # x: tiled over batch, full-extent K
            _resident(w1), _resident(b1),
            _resident(w2), _resident(b2),
            _resident(w3), _resident(b3),
        ],
        out_specs=pl.BlockSpec((tb, N_PAD), lambda i: (i, 0)),
        compiler_params=pltpu.CompilerParams(
            dimension_semantics=("parallel",),          # megacore sharding on v7x
            vmem_limit_bytes=_vmem_limit_bytes(tb, f),
        ),
    )(x, w1, b1, w2, b2, w3, b3)

    # Padded batch rows hold relu(b1)-driven garbage and lanes 2..7 are exactly
    # zero (w3/b3 pads are zero); both are sliced away here.
    return out[:B, :n_out]


def reference_forward(x_nchw, params):
    w1, b1, w2, b2, w3, b3 = params
    t = x_nchw.reshape(x_nchw.shape[0], -1)
    t = jnp.maximum(t @ w1 + b1, 0.0)
    t = jnp.maximum(t @ w2 + b2, 0.0)
    return t @ w3 + b3


if __name__ == "__main__":
    key = jax.random.PRNGKey(0)
    k_x, k_p = jax.random.split(key)

    B, H, W = 2, 16, 16
    x = jax.random.uniform(k_x, (B, 3, H, W), jnp.float32)   # NCHW, like PyTorch
    params = init_params(H, W, k_p)
    prepared = prepare_params(params)

    out = jax.block_until_ready(dqn_forward(x, prepared))

    with jax.default_matmul_precision("highest"):
        ref = jax.block_until_ready(reference_forward(x, params))

    assert out.shape == (B, 2)
    # Whole kernel now runs in f32 (f32 MXU accumulation) -> tight tolerance.
    assert jnp.allclose(out, ref, atol=2e-3, rtol=2e-3)
    print("KERNEL_OK")
</pallas_src>

<mosaic_0001>
module attributes {stable_mosaic.version = 11 : i64} {
  func.func @dqn_kernel(%arg0: i32, %arg1: memref<8x768xf32, #tpu.memory_space<vmem>>, %arg2: memref<768x24xf32, #tpu.memory_space<vmem>>, %arg3: memref<1x24xf32, #tpu.memory_space<vmem>>, %arg4: memref<24x32xf32, #tpu.memory_space<vmem>>, %arg5: memref<1x32xf32, #tpu.memory_space<vmem>>, %arg6: memref<32x8xf32, #tpu.memory_space<vmem>>, %arg7: memref<1x8xf32, #tpu.memory_space<vmem>>, %arg8: memref<8x8xf32, #tpu.memory_space<vmem>>) attributes {dimension_semantics = [#tpu.dimension_semantics<parallel>], iteration_bounds = array<i64: 1>, scalar_prefetch = 0 : i64, scratch_operands = 0 : i64, tpu.core_type = #tpu.core_type<tc>, window_params = [{transform_indices = @transform_0, window_bounds = array<i64: 8, 768>}, {pipeline_mode = #tpu.pipeline_mode<synchronous>, transform_indices = @transform_1, window_bounds = array<i64: 768, 24>}, {pipeline_mode = #tpu.pipeline_mode<synchronous>, transform_indices = @transform_2, window_bounds = array<i64: 1, 24>}, {pipeline_mode = #tpu.pipeline_mode<synchronous>, transform_indices = @transform_3, window_bounds = array<i64: 24, 32>}, {pipeline_mode = #tpu.pipeline_mode<synchronous>, transform_indices = @transform_4, window_bounds = array<i64: 1, 32>}, {pipeline_mode = #tpu.pipeline_mode<synchronous>, transform_indices = @transform_5, window_bounds = array<i64: 32, 8>}, {pipeline_mode = #tpu.pipeline_mode<synchronous>, transform_indices = @transform_6, window_bounds = array<i64: 1, 8>}, {transform_indices = @transform_7, window_bounds = array<i64: 8, 8>}]} {
    %c0 = arith.constant 0 : index
    %c0_0 = arith.constant 0 : index
    %0 = vector.load %arg1[%c0, %c0_0] : memref<8x768xf32, #tpu.memory_space<vmem>>, vector<8x768xf32>
    %c0_1 = arith.constant 0 : index
    %c0_2 = arith.constant 0 : index
    %1 = vector.load %arg2[%c0_1, %c0_2] : memref<768x24xf32, #tpu.memory_space<vmem>>, vector<768x24xf32>
    %cst = arith.constant dense<0.000000e+00> : vector<8x24xf32>
    %2 = tpu.matmul %0, %1, %cst {dimension_numbers = #tpu.dot_dimension_numbers<[1], [0], [0], [1], [0, 0, 1, 1], [], []>} : vector<8x768xf32>, vector<768x24xf32>, vector<8x24xf32> -> vector<8x24xf32>
    %c0_3 = arith.constant 0 : index
    %c0_4 = arith.constant 0 : index
    %3 = vector.load %arg3[%c0_3, %c0_4] : memref<1x24xf32, #tpu.memory_space<vmem>>, vector<1x24xf32>
    %4 = vector.broadcast %3 : vector<1x24xf32> to vector<8x24xf32>
    %5 = arith.addf %2, %4 : vector<8x24xf32>
    %cst_5 = arith.constant 0.000000e+00 : f32
    %6 = vector.broadcast %cst_5 : f32 to vector<8x24xf32>
    %7 = arith.maximumf %5, %6 : vector<8x24xf32>
    %c0_6 = arith.constant 0 : index
    %c0_7 = arith.constant 0 : index
    %8 = vector.load %arg4[%c0_6, %c0_7] : memref<24x32xf32, #tpu.memory_space<vmem>>, vector<24x32xf32>
    %cst_8 = arith.constant dense<0.000000e+00> : vector<8x32xf32>
    %9 = tpu.matmul %7, %8, %cst_8 {dimension_numbers = #tpu.dot_dimension_numbers<[1], [0], [0], [1], [0, 0, 1, 1], [], []>} : vector<8x24xf32>, vector<24x32xf32>, vector<8x32xf32> -> vector<8x32xf32>
    %c0_9 = arith.constant 0 : index
    %c0_10 = arith.constant 0 : index
    %10 = vector.load %arg5[%c0_9, %c0_10] : memref<1x32xf32, #tpu.memory_space<vmem>>, vector<1x32xf32>
    %11 = vector.broadcast %10 : vector<1x32xf32> to vector<8x32xf32>
    %12 = arith.addf %9, %11 : vector<8x32xf32>
    %cst_11 = arith.constant 0.000000e+00 : f32
    %13 = vector.broadcast %cst_11 : f32 to vector<8x32xf32>
    %14 = arith.maximumf %12, %13 : vector<8x32xf32>
    %c0_12 = arith.constant 0 : index
    %c0_13 = arith.constant 0 : index
    %15 = vector.load %arg6[%c0_12, %c0_13] : memref<32x8xf32, #tpu.memory_space<vmem>>, vector<32x8xf32>
    %cst_14 = arith.constant dense<0.000000e+00> : vector<8x8xf32>
    %16 = tpu.matmul %14, %15, %cst_14 {dimension_numbers = #tpu.dot_dimension_numbers<[1], [0], [0], [1], [0, 0, 1, 1], [], []>} : vector<8x32xf32>, vector<32x8xf32>, vector<8x8xf32> -> vector<8x8xf32>
    %c0_15 = arith.constant 0 : index
    %c0_16 = arith.constant 0 : index
    %17 = vector.load %arg7[%c0_15, %c0_16] : memref<1x8xf32, #tpu.memory_space<vmem>>, vector<1x8xf32>
    %18 = vector.broadcast %17 : vector<1x8xf32> to vector<8x8xf32>
    %19 = arith.addf %16, %18 : vector<8x8xf32>
    %c0_17 = arith.constant 0 : index
    %c0_18 = arith.constant 0 : index
    %20 = vector.load %arg8[%c0_17, %c0_18] : memref<8x8xf32, #tpu.memory_space<vmem>>, vector<8x8xf32>
    tpu.vector_store %arg8[%c0_17, %c0_18], %19 {strides = array<i32>} : memref<8x8xf32, #tpu.memory_space<vmem>>, vector<8x8xf32>,
    return
  }
  func.func @transform_0(%arg0: i32) -> (i32, i32) {
    %c0_i32 = arith.constant 0 : i32
    %c0_i32_0 = arith.constant 0 : i32
    return %arg0, %c0_i32 : i32, i32
  }
  func.func @transform_1(%arg0: i32) -> (i32, i32) {
    %c0_i32 = arith.constant 0 : i32
    %c0_i32_0 = arith.constant 0 : i32
    %c0_i32_1 = arith.constant 0 : i32
    return %c0_i32, %c0_i32_0 : i32, i32
  }
  func.func @transform_2(%arg0: i32) -> (i32, i32) {
    %c0_i32 = arith.constant 0 : i32
    %c0_i32_0 = arith.constant 0 : i32
    %c0_i32_1 = arith.constant 0 : i32
    return %c0_i32, %c0_i32_0 : i32, i32
  }
  func.func @transform_3(%arg0: i32) -> (i32, i32) {
    %c0_i32 = arith.constant 0 : i32
    %c0_i32_0 = arith.constant 0 : i32
    %c0_i32_1 = arith.constant 0 : i32
    return %c0_i32, %c0_i32_0 : i32, i32
  }
  func.func @transform_4(%arg0: i32) -> (i32, i32) {
    %c0_i32 = arith.constant 0 : i32
    %c0_i32_0 = arith.constant 0 : i32
    %c0_i32_1 = arith.constant 0 : i32
    return %c0_i32, %c0_i32_0 : i32, i32
  }
  func.func @transform_5(%arg0: i32) -> (i32, i32) {
    %c0_i32 = arith.constant 0 : i32
    %c0_i32_0 = arith.constant 0 : i32
    %c0_i32_1 = arith.constant 0 : i32
    return %c0_i32, %c0_i32_0 : i32, i32
  }
  func.func @transform_6(%arg0: i32) -> (i32, i32) {
    %c0_i32 = arith.constant 0 : i32
    %c0_i32_0 = arith.constant 0 : i32
    %c0_i32_1 = arith.constant 0 : i32
    return %c0_i32, %c0_i32_0 : i32, i32
  }
  func.func @transform_7(%arg0: i32) -> (i32, i32) {
    %c0_i32 = arith.constant 0 : i32
    %c0_i32_0 = arith.constant 0 : i32
    return %arg0, %c0_i32 : i32, i32
  }
}

</mosaic_0001>

<llo_original>
// kernel: tpu_custom_call.1
$region0: #{tpu_custom_call.1}
  #allocation0 [shape = 'u32[]', space=smem, size = 0x4, offset = 0x4, fixed_abs, tag = 'smem constant byte address 0x4 - core index']
  #allocation1 [shape = 'u32[144,128]{1,0:T(1,128)}', space=vmem, size = 0x12000, scoped, tag = 'internal scratch']
  %s0 = inlined_call_operand.vmem [shape: f32[8,768], index: 0, kind: input, shape index: {}]
  %s1 = inlined_call_operand.vmem [shape: f32[768,24], index: 1, kind: input, shape index: {}]
  %s2 = inlined_call_operand.vmem [shape: f32[1,24], index: 2, kind: input, shape index: {}]
  %s3 = inlined_call_operand.vmem [shape: f32[24,32], index: 3, kind: input, shape index: {}]
  %s4 = inlined_call_operand.vmem [shape: f32[1,32], index: 4, kind: input, shape index: {}]
  %s5 = inlined_call_operand.vmem [shape: f32[32,8], index: 5, kind: input, shape index: {}]
  %s6 = inlined_call_operand.vmem [shape: f32[1,8], index: 6, kind: input, shape index: {}]
  %s7 = inlined_call_operand.hbm [shape: f32[8,8], index: 7, kind: output, shape index: {}]
  %s8 = sld [smem:[#allocation0]]
  $region38: #{tpu_custom_call.1} parent=0
    _
  %s10 = ssub.s32 1, %s8
  %s11 = scalar_select 0, %s10, %s8
  $region1: #{tpu_custom_call.1} parent=0
    #allocation2 [shape = 'u8[4096]{0}', space=vmem, size = 0x1000, scoped, tag = 'output window, operand 0, single buffered']
    #allocation3 [shape = 's32[1]{0}', space=sflag, size = 0x4, scoped, tag = 'scoped memory for tpu_custom_call.1']
    %12 = vsyncpa [#allocation3], 0
    // Predicated region
    $region2: #{tpu_custom_call.1} parent=1 // pred_check
      _
    $region3: #{tpu_custom_call.1} parent=1 // pred_check_branch
      %14 = sbr.rel (0) target = $region5
    $region4: #{tpu_custom_call.1} parent=1 // pred_region
      _
    $region5: #{tpu_custom_call.1} parent=1 // pred_fallthru
      _
    // Predicated region
    $region6: #{tpu_custom_call.1} parent=1 // pred_check
      _
    $region7: #{tpu_custom_call.1} parent=1 // pred_check_branch
      %16 = sbr.rel (0) target = $region9
    $region8: #{tpu_custom_call.1} parent=1 // pred_region
      _
    $region9: #{tpu_custom_call.1} parent=1 // pred_fallthru
      _
    // Predicated region
    $region10: #{tpu_custom_call.1} parent=1 // pred_check
      _
    $region11: #{tpu_custom_call.1} parent=1 // pred_check_branch
      %18 = sbr.rel (0) target = $region13
    $region12: #{tpu_custom_call.1} parent=1 // pred_region
      _
    $region13: #{tpu_custom_call.1} parent=1 // pred_fallthru
      _
    // Predicated region
    $region14: #{tpu_custom_call.1} parent=1 // pred_check
      _
    $region15: #{tpu_custom_call.1} parent=1 // pred_check_branch
      %20 = sbr.rel (0) target = $region17
    $region16: #{tpu_custom_call.1} parent=1 // pred_region
      _
    $region17: #{tpu_custom_call.1} parent=1 // pred_fallthru
      _
    // Predicated region
    $region18: #{tpu_custom_call.1} parent=1 // pred_check
      _
    $region19: #{tpu_custom_call.1} parent=1 // pred_check_branch
      %22 = sbr.rel (0) target = $region21
    $region20: #{tpu_custom_call.1} parent=1 // pred_region
      _
    $region21: #{tpu_custom_call.1} parent=1 // pred_fallthru
      _
    // Predicated region
    $region22: #{tpu_custom_call.1} parent=1 // pred_check
      _
    $region23: #{tpu_custom_call.1} parent=1 // pred_check_branch
      %24 = sbr.rel (0) target = $region25
    $region24: #{tpu_custom_call.1} parent=1 // pred_region
      _
    $region25: #{tpu_custom_call.1} parent=1 // pred_fallthru
      _
    // Predicated region
    $region26: #{tpu_custom_call.1} parent=1 // pred_check
      _
    $region27: #{tpu_custom_call.1} parent=1 // pred_check_branch
      %26 = sbr.rel (0) target = $region29
    $region28: #{tpu_custom_call.1} parent=1 // pred_region
      _
    $region29: #{tpu_custom_call.1} parent=1 // pred_fallthru
      _
    %v27 = vld [vmem:[%s0] sm:$0xff]
    %v28 = vld [vmem:[%s0 + $0x8] sm:$0xff]
    %v29 = vld [vmem:[%s0 + $0x10] sm:$0xff]
    %v30 = vld [vmem:[%s0 + $0x18] sm:$0xff]
    %v31 = vld [vmem:[%s0 + $0x20] sm:$0xff]
    %v32 = vld [vmem:[%s0 + $0x28] sm:$0xff]
    %v33 = vld [vmem:[%s1] sm:$0xff]
    %v34 = vld [vmem:[%s1 + $0x8] sm:$0xff]
    %v35 = vld [vmem:[%s1 + $0x10] sm:$0xff]
    %v36 = vld [vmem:[%s1 + $0x18] sm:$0xff]
    %v37 = vld [vmem:[%s1 + $0x20] sm:$0xff]
    %v38 = vld [vmem:[%s1 + $0x28] sm:$0xff]
    %v39 = vld [vmem:[%s1 + $0x30] sm:$0xff]
    %v40 = vld [vmem:[%s1 + $0x38] sm:$0xff]
    %v41 = vld [vmem:[%s1 + $0x40] sm:$0xff]
    %v42 = vld [vmem:[%s1 + $0x48] sm:$0xff]
    %v43 = vld [vmem:[%s1 + $0x50] sm:$0xff]
    %v44 = vld [vmem:[%s1 + $0x58] sm:$0xff]
    %v45 = vld [vmem:[%s1 + $0x60] sm:$0xff]
    %v46 = vld [vmem:[%s1 + $0x68] sm:$0xff]
    %v47 = vld [vmem:[%s1 + $0x70] sm:$0xff]
    %v48 = vld [vmem:[%s1 + $0x78] sm:$0xff]
    %v49 = vld [vmem:[%s1 + $0x80] sm:$0xff]
    %v50 = vld [vmem:[%s1 + $0x88] sm:$0xff]
    %v51 = vld [vmem:[%s1 + $0x90] sm:$0xff]
    %v52 = vld [vmem:[%s1 + $0x98] sm:$0xff]
    %v53 = vld [vmem:[%s1 + $0xa0] sm:$0xff]
    %v54 = vld [vmem:[%s1 + $0xa8] sm:$0xff]
    %v55 = vld [vmem:[%s1 + $0xb0] sm:$0xff]
    %v56 = vld [vmem:[%s1 + $0xb8] sm:$0xff]
    %v57 = vld [vmem:[%s1 + $0xc0] sm:$0xff]
    %v58 = vld [vmem:[%s1 + $0xc8] sm:$0xff]
    %v59 = vld [vmem:[%s1 + $0xd0] sm:$0xff]
    %v60 = vld [vmem:[%s1 + $0xd8] sm:$0xff]
    %v61 = vld [vmem:[%s1 + $0xe0] sm:$0xff]
    %v62 = vld [vmem:[%s1 + $0xe8] sm:$0xff]
    %v63 = vld [vmem:[%s1 + $0xf0] sm:$0xff]
    %v64 = vld [vmem:[%s1 + $0xf8] sm:$0xff]
    %v65 = vld [vmem:[%s1 + $0x100] sm:$0xff]
    %v66 = vld [vmem:[%s1 + $0x108] sm:$0xff]
    %v67 = vld [vmem:[%s1 + $0x110] sm:$0xff]
    %v68 = vld [vmem:[%s1 + $0x118] sm:$0xff]
    %v69 = vld [vmem:[%s1 + $0x120] sm:$0xff]
    %v70 = vld [vmem:[%s1 + $0x128] sm:$0xff]
    %v71 = vld [vmem:[%s1 + $0x130] sm:$0xff]
    %v72 = vld [vmem:[%s1 + $0x138] sm:$0xff]
    %v73 = vld [vmem:[%s1 + $0x140] sm:$0xff]
    %v74 = vld [vmem:[%s1 + $0x148] sm:$0xff]
    %v75 = vld [vmem:[%s1 + $0x150] sm:$0xff]
    %v76 = vld [vmem:[%s1 + $0x158] sm:$0xff]
    %v77 = vld [vmem:[%s1 + $0x160] sm:$0xff]
    %v78 = vld [vmem:[%s1 + $0x168] sm:$0xff]
    %v79 = vld [vmem:[%s1 + $0x170] sm:$0xff]
    %v80 = vld [vmem:[%s1 + $0x178] sm:$0xff]
    %v81 = vld [vmem:[%s1 + $0x180] sm:$0xff]
    %v82 = vld [vmem:[%s1 + $0x188] sm:$0xff]
    %v83 = vld [vmem:[%s1 + $0x190] sm:$0xff]
    %v84 = vld [vmem:[%s1 + $0x198] sm:$0xff]
    %v85 = vld [vmem:[%s1 + $0x1a0] sm:$0xff]
    %v86 = vld [vmem:[%s1 + $0x1a8] sm:$0xff]
    %v87 = vld [vmem:[%s1 + $0x1b0] sm:$0xff]
    %v88 = vld [vmem:[%s1 + $0x1b8] sm:$0xff]
    %v89 = vld [vmem:[%s1 + $0x1c0] sm:$0xff]
    %v90 = vld [vmem:[%s1 + $0x1c8] sm:$0xff]
    %v91 = vld [vmem:[%s1 + $0x1d0] sm:$0xff]
    %v92 = vld [vmem:[%s1 + $0x1d8] sm:$0xff]
    %v93 = vld [vmem:[%s1 + $0x1e0] sm:$0xff]
    %v94 = vld [vmem:[%s1 + $0x1e8] sm:$0xff]
    %v95 = vld [vmem:[%s1 + $0x1f0] sm:$0xff]
    %v96 = vld [vmem:[%s1 + $0x1f8] sm:$0xff]
    %v97 = vld [vmem:[%s1 + $0x200] sm:$0xff]
    %v98 = vld [vmem:[%s1 + $0x208] sm:$0xff]
    %v99 = vld [vmem:[%s1 + $0x210] sm:$0xff]
    %v100 = vld [vmem:[%s1 + $0x218] sm:$0xff]
    %v101 = vld [vmem:[%s1 + $0x220] sm:$0xff]
    %v102 = vld [vmem:[%s1 + $0x228] sm:$0xff]
    %v103 = vld [vmem:[%s1 + $0x230] sm:$0xff]
    %v104 = vld [vmem:[%s1 + $0x238] sm:$0xff]
    %v105 = vld [vmem:[%s1 + $0x240] sm:$0xff]
    %v106 = vld [vmem:[%s1 + $0x248] sm:$0xff]
    %v107 = vld [vmem:[%s1 + $0x250] sm:$0xff]
    %v108 = vld [vmem:[%s1 + $0x258] sm:$0xff]
    %v109 = vld [vmem:[%s1 + $0x260] sm:$0xff]
    %v110 = vld [vmem:[%s1 + $0x268] sm:$0xff]
    %v111 = vld [vmem:[%s1 + $0x270] sm:$0xff]
    %v112 = vld [vmem:[%s1 + $0x278] sm:$0xff]
    %v113 = vld [vmem:[%s1 + $0x280] sm:$0xff]
    %v114 = vld [vmem:[%s1 + $0x288] sm:$0xff]
    %v115 = vld [vmem:[%s1 + $0x290] sm:$0xff]
    %v116 = vld [vmem:[%s1 + $0x298] sm:$0xff]
    %v117 = vld [vmem:[%s1 + $0x2a0] sm:$0xff]
    %v118 = vld [vmem:[%s1 + $0x2a8] sm:$0xff]
    %v119 = vld [vmem:[%s1 + $0x2b0] sm:$0xff]
    %v120 = vld [vmem:[%s1 + $0x2b8] sm:$0xff]
    %v121 = vld [vmem:[%s1 + $0x2c0] sm:$0xff]
    %v122 = vld [vmem:[%s1 + $0x2c8] sm:$0xff]
    %v123 = vld [vmem:[%s1 + $0x2d0] sm:$0xff]
    %v124 = vld [vmem:[%s1 + $0x2d8] sm:$0xff]
    %v125 = vld [vmem:[%s1 + $0x2e0] sm:$0xff]
    %v126 = vld [vmem:[%s1 + $0x2e8] sm:$0xff]
    %v127 = vld [vmem:[%s1 + $0x2f0] sm:$0xff]
    %v128 = vld [vmem:[%s1 + $0x2f8] sm:$0xff]
    %v129 = vld [vmem:[%s2] sm:$0x1]
    %v131 = vlaneseq
    %v132 = vshrl.u32 %v131, 7
    %v133 = vsub.s32 0, %v132
    %v134 = vrot.slane %v129, %v133
    %136 = vmatprep.subr.mxu0 0.0
    %137 = vmatpush1.msra.mxu0 %v48
    %138 = vmatprep.subr.mxu0 0.0
    %139 = vmatpush1.msra.mxu0 %v47
    %140 = vmatprep.subr.mxu0 0.0
    %141 = vmatpush1.msra.mxu0 %v46
    %142 = vmatprep.subr.mxu0 0.0
    %143 = vmatpush1.msra.mxu0 %v45
    %144 = vmatprep.subr.mxu0 0.0
    %145 = vmatpush1.msra.mxu0 %v44
    %146 = vmatprep.subr.mxu0 0.0
    %147 = vmatpush1.msra.mxu0 %v43
    %148 = vmatprep.subr.mxu0 0.0
    %149 = vmatpush1.msra.mxu0 %v42
    %150 = vmatprep.subr.mxu0 0.0
    %151 = vmatpush1.msra.mxu0 %v41
    %152 = vmatprep.subr.mxu0 0.0
    %153 = vmatpush1.msra.mxu0 %v40
    %154 = vmatprep.subr.mxu0 0.0
    %155 = vmatpush1.msra.mxu0 %v39
    %156 = vmatprep.subr.mxu0 0.0
    %157 = vmatpush1.msra.mxu0 %v38
    %158 = vmatprep.subr.mxu0 0.0
    %159 = vmatpush1.msra.mxu0 %v37
    %160 = vmatprep.subr.mxu0 0.0
    %161 = vmatpush1.msra.mxu0 %v36
    %162 = vmatprep.subr.mxu0 0.0
    %163 = vmatpush1.msra.mxu0 %v35
    %164 = vmatprep.subr.mxu0 0.0
    %165 = vmatpush1.msra.mxu0 %v34
    %166 = vmatprep.subr.mxu0 0.0
    %167 = vmatpush1.msra.mxu0 %v33
    %168 = vmatprep.subr.mxu0 0.0
    %169 = vmatpush2.msra.mxu0 %v64
    %170 = vmatprep.subr.mxu0 0.0
    %171 = vmatpush2.msra.mxu0 %v63
    %172 = vmatprep.subr.mxu0 0.0
    %173 = vmatpush2.msra.mxu0 %v62
    %174 = vmatprep.subr.mxu0 0.0
    %175 = vmatpush2.msra.mxu0 %v61
    %176 = vmatprep.subr.mxu0 0.0
    %177 = vmatpush2.msra.mxu0 %v60
    %178 = vmatprep.subr.mxu0 0.0
    %179 = vmatpush2.msra.mxu0 %v59
    %180 = vmatprep.subr.mxu0 0.0
    %181 = vmatpush2.msra.mxu0 %v58
    %182 = vmatprep.subr.mxu0 0.0
    %183 = vmatpush2.msra.mxu0 %v57
    %184 = vmatprep.subr.mxu0 0.0
    %185 = vmatpush2.msra.mxu0 %v56
    %186 = vmatprep.subr.mxu0 0.0
    %187 = vmatpush2.msra.mxu0 %v55
    %188 = vmatprep.subr.mxu0 0.0
    %189 = vmatpush2.msra.mxu0 %v54
    %190 = vmatprep.subr.mxu0 0.0
    %191 = vmatpush2.msra.mxu0 %v53
    %192 = vmatprep.subr.mxu0 0.0
    %193 = vmatpush2.msra.mxu0 %v52
    %194 = vmatprep.subr.mxu0 0.0
    %195 = vmatpush2.msra.mxu0 %v51
    %196 = vmatprep.subr.mxu0 0.0
    %197 = vmatpush2.msra.mxu0 %v50
    %198 = vmatprep.subr.mxu0 0.0
    %199 = vmatpush2.msra.mxu0 %v49
    %200 = vmatprep.mubr.f32.mxu0 %v28
    %201 = vmatmul.mubr.f32.gmra.mxu0 %v27
    %v202 = vpop.f32.mrf.mxu0
    %v203 = vadd.f32 %v134, %v202
    %v204 = vpop.f32.mrf.mxu0
    %205 = vdwg.mxu0
    %206 = vmatprep.subr.mxu0 0.0
    %207 = vmatpush1.msra.mxu0 %v80
    %208 = vmatprep.subr.mxu0 0.0
    %209 = vmatpush1.msra.mxu0 %v79
    %210 = vmatprep.subr.mxu0 0.0
    %211 = vmatpush1.msra.mxu0 %v78
    %212 = vmatprep.subr.mxu0 0.0
    %213 = vmatpush1.msra.mxu0 %v77
    %214 = vmatprep.subr.mxu0 0.0
    %215 = vmatpush1.msra.mxu0 %v76
    %216 = vmatprep.subr.mxu0 0.0
    %217 = vmatpush1.msra.mxu0 %v75
    %218 = vmatprep.subr.mxu0 0.0
    %219 = vmatpush1.msra.mxu0 %v74
    %220 = vmatprep.subr.mxu0 0.0
    %221 = vmatpush1.msra.mxu0 %v73
    %222 = vmatprep.subr.mxu0 0.0
    %223 = vmatpush1.msra.mxu0 %v72
    %224 = vmatprep.subr.mxu0 0.0
    %225 = vmatpush1.msra.mxu0 %v71
    %226 = vmatprep.subr.mxu0 0.0
    %227 = vmatpush1.msra.mxu0 %v70
    %228 = vmatprep.subr.mxu0 0.0
    %229 = vmatpush1.msra.mxu0 %v69
    %230 = vmatprep.subr.mxu0 0.0
    %231 = vmatpush1.msra.mxu0 %v68
    %232 = vmatprep.subr.mxu0 0.0
    %233 = vmatpush1.msra.mxu0 %v67
    %234 = vmatprep.subr.mxu0 0.0
    %235 = vmatpush1.msra.mxu0 %v66
    %236 = vmatprep.subr.mxu0 0.0
    %237 = vmatpush1.msra.mxu0 %v65
    %238 = vmatprep.subr.mxu0 0.0
    %239 = vmatpush2.msra.mxu0 %v96
    %240 = vmatprep.subr.mxu0 0.0
    %241 = vmatpush2.msra.mxu0 %v95
    %242 = vmatprep.subr.mxu0 0.0
    %243 = vmatpush2.msra.mxu0 %v94
    %244 = vmatprep.subr.mxu0 0.0
    %245 = vmatpush2.msra.mxu0 %v93
    %246 = vmatprep.subr.mxu0 0.0
    %247 = vmatpush2.msra.mxu0 %v92
    %248 = vmatprep.subr.mxu0 0.0
    %249 = vmatpush2.msra.mxu0 %v91
    %250 = vmatprep.subr.mxu0 0.0
    %251 = vmatpush2.msra.mxu0 %v90
    %252 = vmatprep.subr.mxu0 0.0
    %253 = vmatpush2.msra.mxu0 %v89
    %254 = vmatprep.subr.mxu0 0.0
    %255 = vmatpush2.msra.mxu0 %v88
    %256 = vmatprep.subr.mxu0 0.0
    %257 = vmatpush2.msra.mxu0 %v87
    %258 = vmatprep.subr.mxu0 0.0
    %259 = vmatpush2.msra.mxu0 %v86
    %260 = vmatprep.subr.mxu0 0.0
    %261 = vmatpush2.msra.mxu0 %v85
    %262 = vmatprep.subr.mxu0 0.0
    %263 = vmatpush2.msra.mxu0 %v84
    %264 = vmatprep.subr.mxu0 0.0
    %265 = vmatpush2.msra.mxu0 %v83
    %266 = vmatprep.subr.mxu0 0.0
    %267 = vmatpush2.msra.mxu0 %v82
    %268 = vmatprep.subr.mxu0 0.0
    %269 = vmatpush2.msra.mxu0 %v81
    %270 = vmatprep.mubr.f32.mxu0 %v30
    %271 = vmatmul.mubr.f32.gmra.mxu0 %v29
    %v272 = vpop.f32.mrf.mxu0
    %v273 = vadd.f32 %v203, %v272
    %v274 = vpop.f32.mrf.mxu0
    %275 = vdwg.mxu0
    %276 = vmatprep.subr.mxu0 0.0
    %277 = vmatpush1.msra.mxu0 %v112
    %278 = vmatprep.subr.mxu0 0.0
    %279 = vmatpush1.msra.mxu0 %v111
    %280 = vmatprep.subr.mxu0 0.0
    %281 = vmatpush1.msra.mxu0 %v110
    %282 = vmatprep.subr.mxu0 0.0
    %283 = vmatpush1.msra.mxu0 %v109
    %284 = vmatprep.subr.mxu0 0.0
    %285 = vmatpush1.msra.mxu0 %v108
    %286 = vmatprep.subr.mxu0 0.0
    %287 = vmatpush1.msra.mxu0 %v107
    %288 = vmatprep.subr.mxu0 0.0
    %289 = vmatpush1.msra.mxu0 %v106
    %290 = vmatprep.subr.mxu0 0.0
    %291 = vmatpush1.msra.mxu0 %v105
    %292 = vmatprep.subr.mxu0 0.0
    %293 = vmatpush1.msra.mxu0 %v104
    %294 = vmatprep.subr.mxu0 0.0
    %295 = vmatpush1.msra.mxu0 %v103
    %296 = vmatprep.subr.mxu0 0.0
    %297 = vmatpush1.msra.mxu0 %v102
    %298 = vmatprep.subr.mxu0 0.0
    %299 = vmatpush1.msra.mxu0 %v101
    %300 = vmatprep.subr.mxu0 0.0
    %301 = vmatpush1.msra.mxu0 %v100
    %302 = vmatprep.subr.mxu0 0.0
    %303 = vmatpush1.msra.mxu0 %v99
    %304 = vmatprep.subr.mxu0 0.0
    %305 = vmatpush1.msra.mxu0 %v98
    %306 = vmatprep.subr.mxu0 0.0
    %307 = vmatpush1.msra.mxu0 %v97
    %308 = vmatprep.subr.mxu0 0.0
    %309 = vmatpush2.msra.mxu0 %v128
    %310 = vmatprep.subr.mxu0 0.0
    %311 = vmatpush2.msra.mxu0 %v127
    %312 = vmatprep.subr.mxu0 0.0
    %313 = vmatpush2.msra.mxu0 %v126
    %314 = vmatprep.subr.mxu0 0.0
    %315 = vmatpush2.msra.mxu0 %v125
    %316 = vmatprep.subr.mxu0 0.0
    %317 = vmatpush2.msra.mxu0 %v124
    %318 = vmatprep.subr.mxu0 0.0
    %319 = vmatpush2.msra.mxu0 %v123
    %320 = vmatprep.subr.mxu0 0.0
    %321 = vmatpush2.msra.mxu0 %v122
    %322 = vmatprep.subr.mxu0 0.0
    %323 = vmatpush2.msra.mxu0 %v121
    %324 = vmatprep.subr.mxu0 0.0
    %325 = vmatpush2.msra.mxu0 %v120
    %326 = vmatprep.subr.mxu0 0.0
    %327 = vmatpush2.msra.mxu0 %v119
    %328 = vmatprep.subr.mxu0 0.0
    %329 = vmatpush2.msra.mxu0 %v118
    %330 = vmatprep.subr.mxu0 0.0
    %331 = vmatpush2.msra.mxu0 %v117
    %332 = vmatprep.subr.mxu0 0.0
    %333 = vmatpush2.msra.mxu0 %v116
    %334 = vmatprep.subr.mxu0 0.0
    %335 = vmatpush2.msra.mxu0 %v115
    %336 = vmatprep.subr.mxu0 0.0
    %337 = vmatpush2.msra.mxu0 %v114
    %338 = vmatprep.subr.mxu0 0.0
    %339 = vmatpush2.msra.mxu0 %v113
    %340 = vmatprep.mubr.f32.mxu0 %v32
    %341 = vmatmul.mubr.f32.gmra.mxu0 %v31
    %v342 = vpop.f32.mrf.mxu0
    %v343 = vadd.f32 %v273, %v342
    %v344 = vpop.f32.mrf.mxu0
    %345 = vdwg.mxu0
    %v346 = vmax.f32 %v343, 0.0
    %v347 = vld [vmem:[%s3] sm:$0xff]
    %v348 = vld [vmem:[%s3 + $0x8] sm:$0xff]
    %v349 = vld [vmem:[%s3 + $0x10] sm:$0xff]
    %v350 = vld [vmem:[%s4] sm:$0x1]
    %v352 = vlaneseq
    %v353 = vshrl.u32 %v352, 7
    %v354 = vsub.s32 0, %v353
    %v355 = vrot.slane %v350, %v354
    %vm357 = vcmask 195584
    %v359 = vsel %vm357, %v346, 0
    %361 = vmatprep.subr.mxu0 0.0
    %362 = vmatpush1.msra.mxu0 0.0
    %363 = vmatprep.subr.mxu0 0.0
    %364 = vmatpush1.msra.mxu0 0.0
    %365 = vmatprep.subr.mxu0 0.0
    %366 = vmatpush1.msra.mxu0 0.0
    %367 = vmatprep.subr.mxu0 0.0
    %368 = vmatpush1.msra.mxu0 0.0
    %369 = vmatprep.subr.mxu0 0.0
    %370 = vmatpush1.msra.mxu0 0.0
    %371 = vmatprep.subr.mxu0 0.0
    %372 = vmatpush1.msra.mxu0 0.0
    %373 = vmatprep.subr.mxu0 0.0
    %374 = vmatpush1.msra.mxu0 0.0
    %375 = vmatprep.subr.mxu0 0.0
    %376 = vmatpush1.msra.mxu0 0.0
    %377 = vmatprep.subr.mxu0 0.0
    %378 = vmatpush1.msra.mxu0 0.0
    %379 = vmatprep.subr.mxu0 0.0
    %380 = vmatpush1.msra.mxu0 0.0
    %381 = vmatprep.subr.mxu0 0.0
    %382 = vmatpush1.msra.mxu0 0.0
    %383 = vmatprep.subr.mxu0 0.0
    %384 = vmatpush1.msra.mxu0 0.0
    %385 = vmatprep.subr.mxu0 0.0
    %386 = vmatpush1.msra.mxu0 0.0
    %387 = vmatprep.subr.mxu0 0.0
    %388 = vmatpush1.msra.mxu0 %v349
    %389 = vmatprep.subr.mxu0 0.0
    %390 = vmatpush1.msra.mxu0 %v348
    %391 = vmatprep.subr.mxu0 0.0
    %392 = vmatpush1.msra.mxu0 %v347
    %393 = vmatprep.subr.mxu0 0.0
    %394 = vmatpush2.msra.mxu0 0.0
    %395 = vmatprep.subr.mxu0 0.0
    %396 = vmatpush2.msra.mxu0 0.0
    %397 = vmatprep.subr.mxu0 0.0
    %398 = vmatpush2.msra.mxu0 0.0
    %399 = vmatprep.subr.mxu0 0.0
    %400 = vmatpush2.msra.mxu0 0.0
    %401 = vmatprep.subr.mxu0 0.0
    %402 = vmatpush2.msra.mxu0 0.0
    %403 = vmatprep.subr.mxu0 0.0
    %404 = vmatpush2.msra.mxu0 0.0
    %405 = vmatprep.subr.mxu0 0.0
    %406 = vmatpush2.msra.mxu0 0.0
    %407 = vmatprep.subr.mxu0 0.0
    %408 = vmatpush2.msra.mxu0 0.0
    %409 = vmatprep.subr.mxu0 0.0
    %410 = vmatpush2.msra.mxu0 0.0
    %411 = vmatprep.subr.mxu0 0.0
    %412 = vmatpush2.msra.mxu0 0.0
    %413 = vmatprep.subr.mxu0 0.0
    %414 = vmatpush2.msra.mxu0 0.0
    %415 = vmatprep.subr.mxu0 0.0
    %416 = vmatpush2.msra.mxu0 0.0
    %417 = vmatprep.subr.mxu0 0.0
    %418 = vmatpush2.msra.mxu0 0.0
    %419 = vmatprep.subr.mxu0 0.0
    %420 = vmatpush2.msra.mxu0 0.0
    %421 = vmatprep.subr.mxu0 0.0
    %422 = vmatpush2.msra.mxu0 0.0
    %423 = vmatprep.subr.mxu0 0.0
    %424 = vmatpush2.msra.mxu0 0.0
    %425 = vmatprep.mubr.f32.mxu0 0.0
    %426 = vmatmul.mubr.f32.gmra.mxu0 %v359
    %v427 = vpop.f32.mrf.mxu0
    %v428 = vadd.f32 %v355, %v427
    %v429 = vpop.f32.mrf.mxu0
    %430 = vdwg.mxu0
    %v431 = vmax.f32 %v428, 0.0
    %v432 = vld [vmem:[%s5] sm:$0xff]
    %v433 = vld [vmem:[%s5 + $0x8] sm:$0xff]
    %v434 = vld [vmem:[%s5 + $0x10] sm:$0xff]
    %v435 = vld [vmem:[%s5 + $0x18] sm:$0xff]
    %v436 = vld [vmem:[%s6] sm:$0x1]
    %v438 = vlaneseq
    %v439 = vshrl.u32 %v438, 7
    %v440 = vsub.s32 0, %v439
    %v441 = vrot.slane %v436, %v440
    %vm443 = vcmask 261120
    %v445 = vsel %vm443, %v431, 0
    %447 = vmatprep.subr.mxu0 0.0
    %448 = vmatpush1.msra.mxu0 0.0
    %449 = vmatprep.subr.mxu0 0.0
    %450 = vmatpush1.msra.mxu0 0.0
    %451 = vmatprep.subr.mxu0 0.0
    %452 = vmatpush1.msra.mxu0 0.0
    %453 = vmatprep.subr.mxu0 0.0
    %454 = vmatpush1.msra.mxu0 0.0
    %455 = vmatprep.subr.mxu0 0.0
    %456 = vmatpush1.msra.mxu0 0.0
    %457 = vmatprep.subr.mxu0 0.0
    %458 = vmatpush1.msra.mxu0 0.0
    %459 = vmatprep.subr.mxu0 0.0
    %460 = vmatpush1.msra.mxu0 0.0
    %461 = vmatprep.subr.mxu0 0.0
    %462 = vmatpush1.msra.mxu0 0.0
    %463 = vmatprep.subr.mxu0 0.0
    %464 = vmatpush1.msra.mxu0 0.0
    %465 = vmatprep.subr.mxu0 0.0
    %466 = vmatpush1.msra.mxu0 0.0
    %467 = vmatprep.subr.mxu0 0.0
    %468 = vmatpush1.msra.mxu0 0.0
    %469 = vmatprep.subr.mxu0 0.0
    %470 = vmatpush1.msra.mxu0 0.0
    %471 = vmatprep.subr.mxu0 0.0
    %472 = vmatpush1.msra.mxu0 %v435
    %473 = vmatprep.subr.mxu0 0.0
    %474 = vmatpush1.msra.mxu0 %v434
    %475 = vmatprep.subr.mxu0 0.0
    %476 = vmatpush1.msra.mxu0 %v433
    %477 = vmatprep.subr.mxu0 0.0
    %478 = vmatpush1.msra.mxu0 %v432
    %479 = vmatprep.subr.mxu0 0.0
    %480 = vmatpush2.msra.mxu0 0.0
    %481 = vmatprep.subr.mxu0 0.0
    %482 = vmatpush2.msra.mxu0 0.0
    %483 = vmatprep.subr.mxu0 0.0
    %484 = vmatpush2.msra.mxu0 0.0
    %485 = vmatprep.subr.mxu0 0.0
    %486 = vmatpush2.msra.mxu0 0.0
    %487 = vmatprep.subr.mxu0 0.0
    %488 = vmatpush2.msra.mxu0 0.0
    %489 = vmatprep.subr.mxu0 0.0
    %490 = vmatpush2.msra.mxu0 0.0
    %491 = vmatprep.subr.mxu0 0.0
    %492 = vmatpush2.msra.mxu0 0.0
    %493 = vmatprep.subr.mxu0 0.0
    %494 = vmatpush2.msra.mxu0 0.0
    %495 = vmatprep.subr.mxu0 0.0
    %496 = vmatpush2.msra.mxu0 0.0
    %497 = vmatprep.subr.mxu0 0.0
    %498 = vmatpush2.msra.mxu0 0.0
    %499 = vmatprep.subr.mxu0 0.0
    %500 = vmatpush2.msra.mxu0 0.0
    %501 = vmatprep.subr.mxu0 0.0
    %502 = vmatpush2.msra.mxu0 0.0
    %503 = vmatprep.subr.mxu0 0.0
    %504 = vmatpush2.msra.mxu0 0.0
    %505 = vmatprep.subr.mxu0 0.0
    %506 = vmatpush2.msra.mxu0 0.0
    %507 = vmatprep.subr.mxu0 0.0
    %508 = vmatpush2.msra.mxu0 0.0
    %509 = vmatprep.subr.mxu0 0.0
    %510 = vmatpush2.msra.mxu0 0.0
    %511 = vmatprep.mubr.f32.mxu0 0.0
    %512 = vmatmul.mubr.f32.gmra.mxu0 %v445
    %v513 = vpop.f32.mrf.mxu0
    %v514 = vadd.f32 %v441, %v513
    %v515 = vpop.f32.mrf.mxu0
    %516 = vdwg.mxu0
    %vm517 = vcmask 64512
    %518 = vst.msk [vmem:[#allocation2] sm:$0xff] %vm517, %v514
    // Predicated region
    $region30: #{tpu_custom_call.1} parent=1 // pred_check
      _
    $region31: #{tpu_custom_call.1} parent=1 // pred_check_branch
      %520 = sbr.rel (0) target = $region33
    $region32: #{tpu_custom_call.1} parent=1 // pred_region
      %s522 = ssub.s32 128, 128
      %523 = vsyncadd [#allocation3], %s522
      %s525 = sshll.u32 [#allocation2], 4
      %s526 = int_to_ptr.vmem [resolvable:$true] %s525
      %528 = dma.vmem_to_hbm [thread:$0]  %s526, 128, %s7, [#allocation3]
    $region33: #{tpu_custom_call.1} parent=1 // pred_fallthru
      _
    // Predicated region
    $region34: #{tpu_custom_call.1} parent=1 // pred_check
      _
    $region35: #{tpu_custom_call.1} parent=1 // pred_check_branch
      %530 = sbr.rel (0) target = $region37
    $region36: #{tpu_custom_call.1} parent=1 // pred_region
      %531 = dma.done [#allocation3], 128
    $region37: #{tpu_custom_call.1} parent=1 // pred_fallthru
      _
    %532 = vsyncpa [#allocation3], 1

</llo_original>
